<compile_context>
chip_gen: v6e
topology: v6e:2x2x1
jax: 0.10.0
libtpu: 0.0.40
codegen_flags: <defaults>
</compile_context>

<pallas_src>
import jax
import jax.numpy as jnp
from jax.experimental import pallas as pl
from jax.experimental.pallas import tpu as pltpu

LANE = 128


def _exact_sigmoid(x):
    # sigmoid(x) == 0.5 * tanh(0.5 * x) + 0.5  (single EUP push per vreg, exact)
    return 0.5 * jnp.tanh(0.5 * x) + 0.5


def _make_predictor_kernel(half_im: float, max_width: float):
    def kernel(pts_ref, w_ref, c_ref, pts_out, w_out, c_out):
        # points: tanh, then affine scale into [0, im_size]
        pts_out[...] = jnp.tanh(pts_ref[...]) * half_im + half_im
        # widths: sigmoid, then affine scale into [1, max_width]
        w_out[...] = (max_width - 1.0) * _exact_sigmoid(w_ref[...]) + 1.0
        # colors: plain sigmoid
        c_out[...] = _exact_sigmoid(c_ref[...])

    return kernel


def _to_lane_rows(x):
    """Reshape a 1-D vector to (rows, 128), padding with zeros only if needed."""
    n = x.shape[0]
    rows = -(-n // LANE)  # ceil div
    pad = rows * LANE - n
    xf = x.astype(jnp.float32)
    if pad:
        xf = jnp.pad(xf, (0, pad))
    return xf.reshape(rows, LANE)


def _from_lane_rows(y, n, like):
    flat = y.reshape(-1)
    if flat.shape[0] != n:
        flat = flat[:n]
    return flat.reshape(like.shape).astype(like.dtype)


def predictor_forward(points, widths, colors, *, max_width=2.0, im_size=224.0):
    """Pallas equivalent of Predictor.forward().

    Args:
      points: f32[2 * paths * (segments * 3 + 1)]
      widths: f32[paths]
      colors: f32[paths * 4]
    Returns:
      dict with 'points', 'widths', 'colors' (same shapes/dtypes as inputs).
    """
    # torch uses float floor-division: im_size // 2
    half_im = float(im_size // 2)

    pts2d = _to_lane_rows(points)
    w2d = _to_lane_rows(widths)
    c2d = _to_lane_rows(colors)

    kernel = _make_predictor_kernel(half_im, float(max_width))

    vmem_spec = pl.BlockSpec(memory_space=pltpu.MemorySpace.VMEM)
    out_p2d, out_w2d, out_c2d = pl.pallas_call(
        kernel,
        out_shape=(
            jax.ShapeDtypeStruct(pts2d.shape, jnp.float32),
            jax.ShapeDtypeStruct(w2d.shape, jnp.float32),
            jax.ShapeDtypeStruct(c2d.shape, jnp.float32),
        ),
        in_specs=[vmem_spec, vmem_spec, vmem_spec],
        out_specs=(vmem_spec, vmem_spec, vmem_spec),
    )(pts2d, w2d, c2d)

    return {
        "points": _from_lane_rows(out_p2d, points.shape[0], points),
        "widths": _from_lane_rows(out_w2d, widths.shape[0], widths),
        "colors": _from_lane_rows(out_c2d, colors.shape[0], colors),
    }


if __name__ == "__main__":
    # Small synthetic configuration (module defaults are paths=512, segments=2).
    paths = 16
    segments = 2
    max_width = 2.0
    im_size = 224.0

    key = jax.random.PRNGKey(0)
    k_points, k_widths, k_colors = jax.random.split(key, 3)

    # Deterministic parameter init, mirroring torch.rand (uniform [0, 1)).
    points = jax.random.uniform(
        k_points, (2 * paths * (segments * 3 + 1),), dtype=jnp.float32)
    widths = jax.random.uniform(k_widths, (paths,), dtype=jnp.float32)
    colors = jax.random.uniform(k_colors, (paths * 4,), dtype=jnp.float32)

    out = predictor_forward(points, widths, colors,
                            max_width=max_width, im_size=im_size)
    jax.block_until_ready(out)

    # Reference check in plain JAX (same math as the PyTorch forward).
    half = float(im_size // 2)
    ref_points = jnp.tanh(points) * half + half
    ref_widths = (max_width - 1.0) * jax.nn.sigmoid(widths) + 1.0
    ref_colors = jax.nn.sigmoid(colors)

    assert out["points"].shape == points.shape
    assert out["widths"].shape == widths.shape
    assert out["colors"].shape == colors.shape
    # Exact tanh / tanh-based sigmoid: only a few ULP + HW tanh difference;
    # points are scaled by im_size/2 = 112, so use a slightly looser atol there.
    assert jnp.allclose(out["points"], ref_points, atol=1e-3)
    assert jnp.allclose(out["widths"], ref_widths, atol=1e-4)
    assert jnp.allclose(out["colors"], ref_colors, atol=1e-4)

    print("KERNEL_OK")
</pallas_src>

<mosaic_0001>
module attributes {stable_mosaic.version = 11 : i64} {
  func.func @kernel(%arg0: memref<2x128xf32, #tpu.memory_space<vmem>>, %arg1: memref<1x128xf32, #tpu.memory_space<vmem>>, %arg2: memref<1x128xf32, #tpu.memory_space<vmem>>, %arg3: memref<2x128xf32, #tpu.memory_space<vmem>>, %arg4: memref<1x128xf32, #tpu.memory_space<vmem>>, %arg5: memref<1x128xf32, #tpu.memory_space<vmem>>) attributes {dimension_semantics = [], scalar_prefetch = 0 : i64, scratch_operands = 0 : i64, tpu.core_type = #tpu.core_type<tc>} {
    %c0 = arith.constant 0 : index
    %c0_0 = arith.constant 0 : index
    %0 = vector.load %arg0[%c0, %c0_0] : memref<2x128xf32, #tpu.memory_space<vmem>>, vector<2x128xf32>
    %1 = math.tanh %0 : vector<2x128xf32>
    %cst = arith.constant 1.120000e+02 : f32
    %2 = vector.broadcast %cst : f32 to vector<2x128xf32>
    %3 = arith.mulf %1, %2 : vector<2x128xf32>
    %cst_1 = arith.constant 1.120000e+02 : f32
    %4 = vector.broadcast %cst_1 : f32 to vector<2x128xf32>
    %5 = arith.addf %3, %4 : vector<2x128xf32>
    %c0_2 = arith.constant 0 : index
    %c0_3 = arith.constant 0 : index
    %6 = vector.load %arg3[%c0_2, %c0_3] : memref<2x128xf32, #tpu.memory_space<vmem>>, vector<2x128xf32>
    tpu.vector_store %arg3[%c0_2, %c0_3], %5 {strides = array<i32>} : memref<2x128xf32, #tpu.memory_space<vmem>>, vector<2x128xf32>,
    %c0_4 = arith.constant 0 : index
    %c0_5 = arith.constant 0 : index
    %7 = vector.load %arg1[%c0_4, %c0_5] : memref<1x128xf32, #tpu.memory_space<vmem>>, vector<1x128xf32>
    %cst_6 = arith.constant 5.000000e-01 : f32
    %8 = vector.broadcast %cst_6 : f32 to vector<1x128xf32>
    %9 = arith.mulf %8, %7 : vector<1x128xf32>
    %10 = math.tanh %9 : vector<1x128xf32>
    %cst_7 = arith.constant 5.000000e-01 : f32
    %11 = vector.broadcast %cst_7 : f32 to vector<1x128xf32>
    %12 = arith.mulf %11, %10 : vector<1x128xf32>
    %cst_8 = arith.constant 5.000000e-01 : f32
    %13 = vector.broadcast %cst_8 : f32 to vector<1x128xf32>
    %14 = arith.addf %12, %13 : vector<1x128xf32>
    %cst_9 = arith.constant 1.000000e+00 : f32
    %15 = vector.broadcast %cst_9 : f32 to vector<1x128xf32>
    %16 = arith.mulf %15, %14 : vector<1x128xf32>
    %cst_10 = arith.constant 1.000000e+00 : f32
    %17 = vector.broadcast %cst_10 : f32 to vector<1x128xf32>
    %18 = arith.addf %16, %17 : vector<1x128xf32>
    %c0_11 = arith.constant 0 : index
    %c0_12 = arith.constant 0 : index
    %19 = vector.load %arg4[%c0_11, %c0_12] : memref<1x128xf32, #tpu.memory_space<vmem>>, vector<1x128xf32>
    tpu.vector_store %arg4[%c0_11, %c0_12], %18 {strides = array<i32>} : memref<1x128xf32, #tpu.memory_space<vmem>>, vector<1x128xf32>,
    %c0_13 = arith.constant 0 : index
    %c0_14 = arith.constant 0 : index
    %20 = vector.load %arg2[%c0_13, %c0_14] : memref<1x128xf32, #tpu.memory_space<vmem>>, vector<1x128xf32>
    %cst_15 = arith.constant 5.000000e-01 : f32
    %21 = vector.broadcast %cst_15 : f32 to vector<1x128xf32>
    %22 = arith.mulf %21, %20 : vector<1x128xf32>
    %23 = math.tanh %22 : vector<1x128xf32>
    %cst_16 = arith.constant 5.000000e-01 : f32
    %24 = vector.broadcast %cst_16 : f32 to vector<1x128xf32>
    %25 = arith.mulf %24, %23 : vector<1x128xf32>
    %cst_17 = arith.constant 5.000000e-01 : f32
    %26 = vector.broadcast %cst_17 : f32 to vector<1x128xf32>
    %27 = arith.addf %25, %26 : vector<1x128xf32>
    %c0_18 = arith.constant 0 : index
    %c0_19 = arith.constant 0 : index
    %28 = vector.load %arg5[%c0_18, %c0_19] : memref<1x128xf32, #tpu.memory_space<vmem>>, vector<1x128xf32>
    tpu.vector_store %arg5[%c0_18, %c0_19], %27 {strides = array<i32>} : memref<1x128xf32, #tpu.memory_space<vmem>>, vector<1x128xf32>,
    return
  }
}

</mosaic_0001>

<llo_original>
// kernel: tpu_custom_call.1
$region0: #{tpu_custom_call.1}
  #allocation0 [shape = 'u32[]', space=smem, size = 0x4, offset = 0x4, fixed_abs, tag = 'smem constant byte address 0x4 - core index']
  #allocation1 [shape = 'u32[144,128]{1,0:T(1,128)}', space=vmem, size = 0x12000, scoped, tag = 'internal scratch']
  %s0 = inlined_call_operand.hbm [shape: f32[2,128], index: 0, kind: input, shape index: {}]
  %s1 = inlined_call_operand.vmem [shape: f32[1,128], index: 1, kind: input, shape index: {}]
  %s2 = inlined_call_operand.vmem [shape: f32[1,128], index: 2, kind: input, shape index: {}]
  %s3 = inlined_call_operand.hbm [shape: f32[2,128], index: 3, kind: output, shape index: {0}]
  %s4 = inlined_call_operand.hbm [shape: f32[1,128], index: 4, kind: output, shape index: {1}]
  %s5 = inlined_call_operand.hbm [shape: f32[1,128], index: 5, kind: output, shape index: {2}]
  %6 = xla_tuple %s3, %s4, %s5
  %s7 = sld [smem:[#allocation0]]
  $region42: #{tpu_custom_call.1} parent=0
    _
  %s9 = ssub.s32 1, %s7
  %s10 = scalar_select 0, %s9, %s7
  $region1: #{tpu_custom_call.1} parent=0
    #allocation2 [shape = 'u8[1024]{0}', space=vmem, size = 0x400, scoped, tag = 'input window, operand 0, single buffered']
    #allocation3 [shape = 's32[1]{0}', space=sflag, size = 0x4, scoped, tag = 'scoped memory for tpu_custom_call.1']
    #allocation4 [shape = 's32[1]{0}', space=sflag, size = 0x4, scoped, tag = 'scoped memory for tpu_custom_call.1']
    #allocation5 [shape = 'u8[1024]{0}', space=vmem, size = 0x400, scoped, tag = 'output window, operand 0, single buffered']
    #allocation6 [shape = 'u8[512]{0}', space=vmem, size = 0x400, scoped, tag = 'output window, operand 1, single buffered']
    #allocation7 [shape = 's32[1]{0}', space=sflag, size = 0x4, scoped, tag = 'scoped memory for tpu_custom_call.1']
    #allocation8 [shape = 'u8[512]{0}', space=vmem, size = 0x400, scoped, tag = 'output window, operand 2, single buffered']
    %11 = vsyncpa [#allocation3], 0
    %12 = vsyncpa [#allocation4], 0
    %13 = vsyncpa [#allocation7], 0
    // Predicated region
    $region2: #{tpu_custom_call.1} parent=1 // pred_check
      _
    $region3: #{tpu_custom_call.1} parent=1 // pred_check_branch
      %15 = sbr.rel (0) target = $region5
    $region4: #{tpu_custom_call.1} parent=1 // pred_region
      %s17 = ssub.s32 32, 32
      %18 = vsyncadd [#allocation3], %s17
      %s20 = sshll.u32 [#allocation2], 4
      %s21 = int_to_ptr.vmem [resolvable:$true] %s20
      %23 = dma.hbm_to_vmem [thread:$0]  %s0, 32, %s21, [#allocation3]
    $region5: #{tpu_custom_call.1} parent=1 // pred_fallthru
      _
    // Predicated region
    $region6: #{tpu_custom_call.1} parent=1 // pred_check
      _
    $region7: #{tpu_custom_call.1} parent=1 // pred_check_branch
      %25 = sbr.rel (0) target = $region9
    $region8: #{tpu_custom_call.1} parent=1 // pred_region
      _
    $region9: #{tpu_custom_call.1} parent=1 // pred_fallthru
      _
    // Predicated region
    $region10: #{tpu_custom_call.1} parent=1 // pred_check
      _
    $region11: #{tpu_custom_call.1} parent=1 // pred_check_branch
      %27 = sbr.rel (0) target = $region13
    $region12: #{tpu_custom_call.1} parent=1 // pred_region
      _
    $region13: #{tpu_custom_call.1} parent=1 // pred_fallthru
      _
    // Predicated region
    $region14: #{tpu_custom_call.1} parent=1 // pred_check
      _
    $region15: #{tpu_custom_call.1} parent=1 // pred_check_branch
      %29 = sbr.rel (0) target = $region17
    $region16: #{tpu_custom_call.1} parent=1 // pred_region
      %30 = dma.done [#allocation3], 32
    $region17: #{tpu_custom_call.1} parent=1 // pred_fallthru
      _
    %v31 = vld [vmem:[#allocation2] sm:$0x3]
    %v32 = vtanh.pop %v31
    %v33 = vmul.f32 %v32, 112.0
    %v34 = vadd.f32 %v33, 112.0
    %35 = vst [vmem:[#allocation5] sm:$0x3] %v34
    %v36 = vld [vmem:[%s1] sm:$0x1]
    %v37 = vmul.f32 %v36, 0.5
    %v38 = vtanh.pop %v37
    %v39 = vmul.f32 %v38, 0.5
    %v40 = vadd.f32 %v39, 0.5
    %v41 = vadd.f32 %v40, 1.0
    %42 = vst [vmem:[#allocation6] sm:$0x1] %v41
    %v43 = vld [vmem:[%s2] sm:$0x1]
    %v44 = vmul.f32 %v43, 0.5
    %v45 = vtanh.pop %v44
    %v46 = vmul.f32 %v45, 0.5
    %v47 = vadd.f32 %v46, 0.5
    %48 = vst [vmem:[#allocation8] sm:$0x1] %v47
    // Predicated region
    $region18: #{tpu_custom_call.1} parent=1 // pred_check
      _
    $region19: #{tpu_custom_call.1} parent=1 // pred_check_branch
      %50 = sbr.rel (0) target = $region21
    $region20: #{tpu_custom_call.1} parent=1 // pred_region
      %s52 = ssub.s32 32, 32
      %53 = vsyncadd [#allocation4], %s52
      %s55 = sshll.u32 [#allocation5], 4
      %s56 = int_to_ptr.vmem [resolvable:$true] %s55
      %58 = dma.vmem_to_hbm [thread:$0]  %s56, 32, %s3, [#allocation4]
    $region21: #{tpu_custom_call.1} parent=1 // pred_fallthru
      _
    // Predicated region
    $region22: #{tpu_custom_call.1} parent=1 // pred_check
      _
    $region23: #{tpu_custom_call.1} parent=1 // pred_check_branch
      %60 = sbr.rel (0) target = $region25
    $region24: #{tpu_custom_call.1} parent=1 // pred_region
      %s62 = ssub.s32 16, 16
      %63 = vsyncadd [#allocation7], %s62
      %s65 = sshll.u32 [#allocation6], 4
      %s66 = int_to_ptr.vmem [resolvable:$true] %s65
      %68 = dma.vmem_to_hbm [thread:$0]  %s66, 16, %s4, [#allocation7]
    $region25: #{tpu_custom_call.1} parent=1 // pred_fallthru
      _
    // Predicated region
    $region26: #{tpu_custom_call.1} parent=1 // pred_check
      _
    $region27: #{tpu_custom_call.1} parent=1 // pred_check_branch
      %70 = sbr.rel (0) target = $region29
    $region28: #{tpu_custom_call.1} parent=1 // pred_region
      %s72 = ssub.s32 16, 16
      %73 = vsyncadd [#allocation7], %s72
      %s75 = sshll.u32 [#allocation8], 4
      %s76 = int_to_ptr.vmem [resolvable:$true] %s75
      %78 = dma.vmem_to_hbm [thread:$0]  %s76, 16, %s5, [#allocation7]
    $region29: #{tpu_custom_call.1} parent=1 // pred_fallthru
      _
    // Predicated region
    $region30: #{tpu_custom_call.1} parent=1 // pred_check
      _
    $region31: #{tpu_custom_call.1} parent=1 // pred_check_branch
      %80 = sbr.rel (0) target = $region33
    $region32: #{tpu_custom_call.1} parent=1 // pred_region
      %81 = dma.done [#allocation4], 32
    $region33: #{tpu_custom_call.1} parent=1 // pred_fallthru
      _
    // Predicated region
    $region34: #{tpu_custom_call.1} parent=1 // pred_check
      _
    $region35: #{tpu_custom_call.1} parent=1 // pred_check_branch
      %83 = sbr.rel (0) target = $region37
    $region36: #{tpu_custom_call.1} parent=1 // pred_region
      %84 = dma.done [#allocation7], 16
    $region37: #{tpu_custom_call.1} parent=1 // pred_fallthru
      _
    // Predicated region
    $region38: #{tpu_custom_call.1} parent=1 // pred_check
      _
    $region39: #{tpu_custom_call.1} parent=1 // pred_check_branch
      %86 = sbr.rel (0) target = $region41
    $region40: #{tpu_custom_call.1} parent=1 // pred_region
      %87 = dma.done [#allocation7], 16
    $region41: #{tpu_custom_call.1} parent=1 // pred_fallthru
      _
    %88 = vsyncpa [#allocation3], 1
    %89 = vsyncpa [#allocation4], 1
    %90 = vsyncpa [#allocation7], 1

</llo_original>
